<compile_context>
chip_gen: v6e
topology: v6e:2x2x1
jax: 0.10.0
libtpu: 0.0.40
codegen_flags: <defaults>
</compile_context>

<pallas_src>
import functools

import jax
import jax.numpy as jnp
from jax import lax
from jax.experimental import pallas as pl
from jax.experimental.pallas import tpu as pltpu


def _round_up(x, m):
    return (x + m - 1) // m * m


def _convblock_kernel(x_ref, w1_ref, b1_ref, w2_ref, b2_ref, w3_ref, b3_ref,
                      o_ref, *, seq_len, cin, cin_pad):
    """One grid step: a (Cin, batch_block*seq_len) slab through all three convs."""
    nt = x_ref.shape[-1]                      # batch_block * seq_len, lane axis

    # Periodic boundary masks (built once, reused by all three layers).
    # Column n of the slab is batch element n // L, position n % L; the roll
    # wraparound at position 0 / L-1 is masked to 0, which both implements the
    # conv zero padding and prevents cross-batch leakage.
    pos = lax.broadcasted_iota(jnp.int32, (1, nt), 1) % seq_len
    not_first = (pos != 0).astype(jnp.float32)
    not_last = (pos != seq_len - 1).astype(jnp.float32)

    def conv_k3(x, w_ref, b_ref, relu):
        # x: (Cpad, nt) f32, L folded with batch on the lane axis.
        # w_ref: (Crows, 3*Cpad) fused weight, tap-major [t-1, t, t+1].
        x_prev = pltpu.roll(x, shift=1, axis=1) * not_first       # x[:, n-1]
        x_next = pltpu.roll(x, shift=nt - 1, axis=1) * not_last   # x[:, n+1]
        taps = jnp.concatenate([x_prev, x, x_next], axis=0)       # (3*Cpad, nt), tile-aligned seams
        y = jnp.dot(w_ref[...], taps,
                    preferred_element_type=jnp.float32) + b_ref[...]
        return jnp.maximum(y, 0.0) if relu else y

    x = x_ref[...].astype(jnp.float32)                            # (Cin, nt)
    if cin_pad > cin:
        # One-time zero pad to an 8-sublane multiple so every taps concat below
        # is tile aligned (padded weight columns are zero, so values are exact).
        x = jnp.concatenate(
            [x, jnp.zeros((cin_pad - cin, nt), jnp.float32)], axis=0)

    h1 = conv_k3(x, w1_ref, b1_ref, relu=True)     # (Cmid_pad, nt), pad rows == 0
    h2 = conv_k3(h1, w2_ref, b2_ref, relu=True)    # (Cmid_pad, nt), pad rows == 0
    y = conv_k3(h2, w3_ref, b3_ref, relu=False)    # (Cout, nt)
    o_ref[...] = y.astype(o_ref.dtype)


def _pick_batch_block(B, cin, cout, cpad_max, L,
                      vmem_budget=12 * 1024 * 1024):
    """Largest divisor of B that fits the VMEM budget and keeps >= 2 grid steps."""
    # Rough per-batch-element VMEM: double-buffered in/out blocks + intermediates.
    bytes_per_elem = 4 * L * (2 * cin + 2 * cout + 8 * cpad_max)
    best = 1
    for bb in range(1, B + 1):
        if B % bb:
            continue
        if B >= 2 and B // bb < 2:      # keep both v7x TensorCores busy
            continue
        if bb * bytes_per_elem > vmem_budget:
            continue
        best = bb
    return best


def conv_block(x_ncl, params, *, batch_block=None):
    """x_ncl: (B, Cin, L) float32 (PyTorch NCL). params: torch-layout weights/biases."""
    B, Cin, L = x_ncl.shape
    Cmid = params["w1"].shape[0]
    Cout = params["w3"].shape[0]

    cin_pad = _round_up(Cin, 8)
    cmid_pad = _round_up(Cmid, 8)

    if batch_block is None:
        batch_block = _pick_batch_block(B, Cin, Cout, max(cin_pad, cmid_pad), L)
    assert B % batch_block == 0, (B, batch_block)

    # One-time layout change: (B, Cin, L) -> (Cin, B*L) so the whole batch block
    # folds into the matmul's lane/N axis (lane-dense compute and stores).
    x_flat = jnp.transpose(x_ncl, (1, 0, 2)).reshape(Cin, B * L)

    # torch (Co, Ci, 3) -> fused (Co_pad, 3*Ci_pad), tap-major [t-1, t, t+1].
    # Zero-padded columns match the zero-padded input channels; zero-padded rows
    # (with zero bias) keep padded hidden channels exactly zero after ReLU.
    def fuse_w(w, ci_pad, co_pad):
        co, ci, k = w.shape
        wf = jnp.zeros((co_pad, k, ci_pad), w.dtype)
        wf = wf.at[:co, :, :ci].set(jnp.transpose(w, (0, 2, 1)))
        return wf.reshape(co_pad, k * ci_pad)

    def pad_b(b, co_pad):
        return jnp.zeros((co_pad, 1), b.dtype).at[:b.shape[0], 0].set(b)

    w1 = fuse_w(params["w1"], cin_pad, cmid_pad)
    w2 = fuse_w(params["w2"], cmid_pad, cmid_pad)
    w3 = fuse_w(params["w3"], cmid_pad, Cout)       # last layer: exact Cout rows
    b1 = pad_b(params["b1"], cmid_pad)
    b2 = pad_b(params["b2"], cmid_pad)
    b3 = pad_b(params["b3"], Cout)

    nt = batch_block * L                            # lanes per grid step
    grid_steps = (B * L) // nt

    kernel = functools.partial(_convblock_kernel,
                               seq_len=L, cin=Cin, cin_pad=cin_pad)

    full = lambda shape: pl.BlockSpec(shape, lambda g: (0,) * len(shape))

    out_flat = pl.pallas_call(
        kernel,
        out_shape=jax.ShapeDtypeStruct((Cout, B * L), x_ncl.dtype),
        grid=(grid_steps,),
        in_specs=[
            pl.BlockSpec((Cin, nt), lambda g: (0, g)),   # x slab (lane axis tiled)
            full(w1.shape), full(b1.shape),
            full(w2.shape), full(b2.shape),
            full(w3.shape), full(b3.shape),
        ],
        out_specs=pl.BlockSpec((Cout, nt), lambda g: (0, g)),
        compiler_params=pltpu.CompilerParams(
            dimension_semantics=("parallel",),
            vmem_limit_bytes=32 * 1024 * 1024),
    )(x_flat, w1, b1, w2, b2, w3, b3)

    # (Cout, B*L) -> (B, Cout, L)
    return jnp.transpose(out_flat.reshape(Cout, B, L), (1, 0, 2))


def conv_block_ref(x_ncl, params):
    """Pure-JAX reference using lax.conv_general_dilated (NCL, OIL), f32 precision."""
    def conv(x, w, b):
        y = lax.conv_general_dilated(
            x, w, window_strides=(1,), padding=((1, 1),),
            dimension_numbers=("NCH", "OIH", "NCH"),
            precision=lax.Precision.HIGHEST)
        return y + b[None, :, None]

    h = jax.nn.relu(conv(x_ncl, params["w1"], params["b1"]))
    h = jax.nn.relu(conv(h, params["w2"], params["b2"]))
    return conv(h, params["w3"], params["b3"])


if __name__ == "__main__":
    key = jax.random.PRNGKey(0)
    B, Cin, Cmid, Cout, L = 4, 4, 8, 4, 128

    ks = jax.random.split(key, 7)
    params = {
        "w1": jax.random.normal(ks[0], (Cmid, Cin, 3), jnp.float32) * 0.2,
        "b1": jax.random.normal(ks[1], (Cmid,), jnp.float32) * 0.1,
        "w2": jax.random.normal(ks[2], (Cmid, Cmid, 3), jnp.float32) * 0.2,
        "b2": jax.random.normal(ks[3], (Cmid,), jnp.float32) * 0.1,
        "w3": jax.random.normal(ks[4], (Cout, Cmid, 3), jnp.float32) * 0.2,
        "b3": jax.random.normal(ks[5], (Cout,), jnp.float32) * 0.1,
    }
    x = jax.random.normal(ks[6], (B, Cin, L), jnp.float32)

    out = jax.block_until_ready(conv_block(x, params))
    ref = jax.block_until_ready(conv_block_ref(x, params))

    assert out.shape == (B, Cout, L), out.shape
    err = float(jnp.max(jnp.abs(out - ref)))
    assert jnp.allclose(out, ref, atol=1e-4, rtol=1e-4), err
    print("KERNEL_OK")
</pallas_src>

<mosaic_0001>
module attributes {stable_mosaic.version = 11 : i64} {
  func.func @_convblock_kernel(%arg0: i32, %arg1: memref<4x256xf32, #tpu.memory_space<vmem>>, %arg2: memref<8x24xf32, #tpu.memory_space<vmem>>, %arg3: memref<8x1xf32, #tpu.memory_space<vmem>>, %arg4: memref<8x24xf32, #tpu.memory_space<vmem>>, %arg5: memref<8x1xf32, #tpu.memory_space<vmem>>, %arg6: memref<4x24xf32, #tpu.memory_space<vmem>>, %arg7: memref<4x1xf32, #tpu.memory_space<vmem>>, %arg8: memref<4x256xf32, #tpu.memory_space<vmem>>) attributes {dimension_semantics = [#tpu.dimension_semantics<parallel>], iteration_bounds = array<i64: 2>, scalar_prefetch = 0 : i64, scratch_operands = 0 : i64, tpu.core_type = #tpu.core_type<tc>, window_params = [{transform_indices = @transform_0, window_bounds = array<i64: 4, 256>}, {pipeline_mode = #tpu.pipeline_mode<synchronous>, transform_indices = @transform_1, window_bounds = array<i64: 8, 24>}, {pipeline_mode = #tpu.pipeline_mode<synchronous>, transform_indices = @transform_2, window_bounds = array<i64: 8, 1>}, {pipeline_mode = #tpu.pipeline_mode<synchronous>, transform_indices = @transform_3, window_bounds = array<i64: 8, 24>}, {pipeline_mode = #tpu.pipeline_mode<synchronous>, transform_indices = @transform_4, window_bounds = array<i64: 8, 1>}, {pipeline_mode = #tpu.pipeline_mode<synchronous>, transform_indices = @transform_5, window_bounds = array<i64: 4, 24>}, {pipeline_mode = #tpu.pipeline_mode<synchronous>, transform_indices = @transform_6, window_bounds = array<i64: 4, 1>}, {transform_indices = @transform_7, window_bounds = array<i64: 4, 256>}]} {
    %0 = tpu.iota {dimensions = array<i32: 1>} : vector<1x256xi32>
    %c128_i32 = arith.constant 128 : i32
    %c0_i32 = arith.constant 0 : i32
    %1 = arith.cmpi eq, %c128_i32, %c0_i32 : i32
    %c1_i32 = arith.constant 1 : i32
    %2 = arith.select %1, %c1_i32, %c128_i32 : i32
    %3 = vector.broadcast %2 : i32 to vector<1x256xi32>
    %4 = arith.remsi %0, %3 : vector<1x256xi32>
    %c0_i32_0 = arith.constant 0 : i32
    %5 = vector.broadcast %c0_i32_0 : i32 to vector<1x256xi32>
    %6 = arith.cmpi ne, %4, %5 : vector<1x256xi32>
    %c0_i32_1 = arith.constant 0 : i32
    %7 = vector.broadcast %c0_i32_1 : i32 to vector<1x256xi32>
    %8 = arith.cmpi slt, %4, %7 : vector<1x256xi32>
    %c0_i32_2 = arith.constant 0 : i32
    %9 = arith.cmpi slt, %2, %c0_i32_2 : i32
    %10 = vector.broadcast %9 : i1 to vector<1x256xi1>
    %11 = vector.broadcast %10 : vector<1x256xi1> to vector<1x256xi1>
    %12 = arith.xori %8, %11 : vector<1x256xi1>
    %13 = arith.andi %12, %6 : vector<1x256xi1>
    %14 = vector.broadcast %2 : i32 to vector<1x256xi32>
    %15 = arith.addi %4, %14 : vector<1x256xi32>
    %16 = arith.select %13, %15, %4 : vector<1x256xi1>, vector<1x256xi32>
    %c0_i32_3 = arith.constant 0 : i32
    %17 = vector.broadcast %c0_i32_3 : i32 to vector<1x256xi32>
    %18 = arith.cmpi ne, %16, %17 : vector<1x256xi32>
    %19 = arith.extui %18 : vector<1x256xi1> to vector<1x256xi32>
    %20 = arith.sitofp %19 : vector<1x256xi32> to vector<1x256xf32>
    %c127_i32 = arith.constant 127 : i32
    %21 = vector.broadcast %c127_i32 : i32 to vector<1x256xi32>
    %22 = arith.cmpi ne, %16, %21 : vector<1x256xi32>
    %23 = arith.extui %22 : vector<1x256xi1> to vector<1x256xi32>
    %24 = arith.sitofp %23 : vector<1x256xi32> to vector<1x256xf32>
    %c0 = arith.constant 0 : index
    %c0_4 = arith.constant 0 : index
    %25 = vector.load %arg1[%c0, %c0_4] : memref<4x256xf32, #tpu.memory_space<vmem>>, vector<4x256xf32>
    %cst = arith.constant 0.000000e+00 : f32
    %26 = vector.broadcast %cst : f32 to vector<4x256xf32>
    %27 = tpu.concatenate %25, %26 in 0 : vector<4x256xf32>, vector<4x256xf32> -> vector<8x256xf32>
    %c1_i32_5 = arith.constant 1 : i32
    %28 = tpu.dynamic_rotate %27 by %c1_i32_5 dim 1 : vector<8x256xf32>, i32 -> vector<8x256xf32>
    %29 = vector.broadcast %20 : vector<1x256xf32> to vector<8x256xf32>
    %30 = arith.mulf %28, %29 : vector<8x256xf32>
    %c255_i32 = arith.constant 255 : i32
    %31 = tpu.dynamic_rotate %27 by %c255_i32 dim 1 : vector<8x256xf32>, i32 -> vector<8x256xf32>
    %32 = vector.broadcast %24 : vector<1x256xf32> to vector<8x256xf32>
    %33 = arith.mulf %31, %32 : vector<8x256xf32>
    %34 = tpu.concatenate %30, %27, %33 in 0 : vector<8x256xf32>, vector<8x256xf32>, vector<8x256xf32> -> vector<24x256xf32>
    %c0_6 = arith.constant 0 : index
    %c0_7 = arith.constant 0 : index
    %35 = vector.load %arg2[%c0_6, %c0_7] : memref<8x24xf32, #tpu.memory_space<vmem>>, vector<8x24xf32>
    %cst_8 = arith.constant dense<0.000000e+00> : vector<8x256xf32>
    %36 = tpu.matmul %35, %34, %cst_8 {dimension_numbers = #tpu.dot_dimension_numbers<[1], [0], [0], [1], [0, 0, 1, 1], [], []>} : vector<8x24xf32>, vector<24x256xf32>, vector<8x256xf32> -> vector<8x256xf32>
    %c0_9 = arith.constant 0 : index
    %c0_10 = arith.constant 0 : index
    %37 = vector.load %arg3[%c0_9, %c0_10] : memref<8x1xf32, #tpu.memory_space<vmem>>, vector<8x1xf32>
    %38 = vector.broadcast %37 : vector<8x1xf32> to vector<8x256xf32>
    %39 = arith.addf %36, %38 : vector<8x256xf32>
    %cst_11 = arith.constant 0.000000e+00 : f32
    %40 = vector.broadcast %cst_11 : f32 to vector<8x256xf32>
    %41 = arith.maximumf %39, %40 : vector<8x256xf32>
    %c1_i32_12 = arith.constant 1 : i32
    %42 = tpu.dynamic_rotate %41 by %c1_i32_12 dim 1 : vector<8x256xf32>, i32 -> vector<8x256xf32>
    %43 = vector.broadcast %20 : vector<1x256xf32> to vector<8x256xf32>
    %44 = arith.mulf %42, %43 : vector<8x256xf32>
    %c255_i32_13 = arith.constant 255 : i32
    %45 = tpu.dynamic_rotate %41 by %c255_i32_13 dim 1 : vector<8x256xf32>, i32 -> vector<8x256xf32>
    %46 = vector.broadcast %24 : vector<1x256xf32> to vector<8x256xf32>
    %47 = arith.mulf %45, %46 : vector<8x256xf32>
    %48 = tpu.concatenate %44, %41, %47 in 0 : vector<8x256xf32>, vector<8x256xf32>, vector<8x256xf32> -> vector<24x256xf32>
    %c0_14 = arith.constant 0 : index
    %c0_15 = arith.constant 0 : index
    %49 = vector.load %arg4[%c0_14, %c0_15] : memref<8x24xf32, #tpu.memory_space<vmem>>, vector<8x24xf32>
    %cst_16 = arith.constant dense<0.000000e+00> : vector<8x256xf32>
    %50 = tpu.matmul %49, %48, %cst_16 {dimension_numbers = #tpu.dot_dimension_numbers<[1], [0], [0], [1], [0, 0, 1, 1], [], []>} : vector<8x24xf32>, vector<24x256xf32>, vector<8x256xf32> -> vector<8x256xf32>
    %c0_17 = arith.constant 0 : index
    %c0_18 = arith.constant 0 : index
    %51 = vector.load %arg5[%c0_17, %c0_18] : memref<8x1xf32, #tpu.memory_space<vmem>>, vector<8x1xf32>
    %52 = vector.broadcast %51 : vector<8x1xf32> to vector<8x256xf32>
    %53 = arith.addf %50, %52 : vector<8x256xf32>
    %cst_19 = arith.constant 0.000000e+00 : f32
    %54 = vector.broadcast %cst_19 : f32 to vector<8x256xf32>
    %55 = arith.maximumf %53, %54 : vector<8x256xf32>
    %c1_i32_20 = arith.constant 1 : i32
    %56 = tpu.dynamic_rotate %55 by %c1_i32_20 dim 1 : vector<8x256xf32>, i32 -> vector<8x256xf32>
    %57 = vector.broadcast %20 : vector<1x256xf32> to vector<8x256xf32>
    %58 = arith.mulf %56, %57 : vector<8x256xf32>
    %c255_i32_21 = arith.constant 255 : i32
    %59 = tpu.dynamic_rotate %55 by %c255_i32_21 dim 1 : vector<8x256xf32>, i32 -> vector<8x256xf32>
    %60 = vector.broadcast %24 : vector<1x256xf32> to vector<8x256xf32>
    %61 = arith.mulf %59, %60 : vector<8x256xf32>
    %62 = tpu.concatenate %58, %55, %61 in 0 : vector<8x256xf32>, vector<8x256xf32>, vector<8x256xf32> -> vector<24x256xf32>
    %c0_22 = arith.constant 0 : index
    %c0_23 = arith.constant 0 : index
    %63 = vector.load %arg6[%c0_22, %c0_23] : memref<4x24xf32, #tpu.memory_space<vmem>>, vector<4x24xf32>
    %cst_24 = arith.constant dense<0.000000e+00> : vector<4x256xf32>
    %64 = tpu.matmul %63, %62, %cst_24 {dimension_numbers = #tpu.dot_dimension_numbers<[1], [0], [0], [1], [0, 0, 1, 1], [], []>} : vector<4x24xf32>, vector<24x256xf32>, vector<4x256xf32> -> vector<4x256xf32>
    %c0_25 = arith.constant 0 : index
    %c0_26 = arith.constant 0 : index
    %65 = vector.load %arg7[%c0_25, %c0_26] : memref<4x1xf32, #tpu.memory_space<vmem>>, vector<4x1xf32>
    %66 = vector.broadcast %65 : vector<4x1xf32> to vector<4x256xf32>
    %67 = arith.addf %64, %66 : vector<4x256xf32>
    %c0_27 = arith.constant 0 : index
    %c0_28 = arith.constant 0 : index
    %68 = vector.load %arg8[%c0_27, %c0_28] : memref<4x256xf32, #tpu.memory_space<vmem>>, vector<4x256xf32>
    tpu.vector_store %arg8[%c0_27, %c0_28], %67 {strides = array<i32>} : memref<4x256xf32, #tpu.memory_space<vmem>>, vector<4x256xf32>,
    return
  }
  func.func @transform_0(%arg0: i32) -> (i32, i32) {
    %c0_i32 = arith.constant 0 : i32
    %c0_i32_0 = arith.constant 0 : i32
    return %c0_i32, %arg0 : i32, i32
  }
  func.func @transform_1(%arg0: i32) -> (i32, i32) {
    %c0_i32 = arith.constant 0 : i32
    %c0_i32_0 = arith.constant 0 : i32
    %c0_i32_1 = arith.constant 0 : i32
    return %c0_i32, %c0_i32_0 : i32, i32
  }
  func.func @transform_2(%arg0: i32) -> (i32, i32) {
    %c0_i32 = arith.constant 0 : i32
    %c0_i32_0 = arith.constant 0 : i32
    %c0_i32_1 = arith.constant 0 : i32
    return %c0_i32, %c0_i32_0 : i32, i32
  }
  func.func @transform_3(%arg0: i32) -> (i32, i32) {
    %c0_i32 = arith.constant 0 : i32
    %c0_i32_0 = arith.constant 0 : i32
    %c0_i32_1 = arith.constant 0 : i32
    return %c0_i32, %c0_i32_0 : i32, i32
  }
  func.func @transform_4(%arg0: i32) -> (i32, i32) {
    %c0_i32 = arith.constant 0 : i32
    %c0_i32_0 = arith.constant 0 : i32
    %c0_i32_1 = arith.constant 0 : i32
    return %c0_i32, %c0_i32_0 : i32, i32
  }
  func.func @transform_5(%arg0: i32) -> (i32, i32) {
    %c0_i32 = arith.constant 0 : i32
    %c0_i32_0 = arith.constant 0 : i32
    %c0_i32_1 = arith.constant 0 : i32
    return %c0_i32, %c0_i32_0 : i32, i32
  }
  func.func @transform_6(%arg0: i32) -> (i32, i32) {
    %c0_i32 = arith.constant 0 : i32
    %c0_i32_0 = arith.constant 0 : i32
    %c0_i32_1 = arith.constant 0 : i32
    return %c0_i32, %c0_i32_0 : i32, i32
  }
  func.func @transform_7(%arg0: i32) -> (i32, i32) {
    %c0_i32 = arith.constant 0 : i32
    %c0_i32_0 = arith.constant 0 : i32
    return %c0_i32, %arg0 : i32, i32
  }
}

</mosaic_0001>

<llo_original>
// kernel: tpu_custom_call.1
$region0: #{tpu_custom_call.1}
  #allocation0 [shape = 'u32[]', space=smem, size = 0x4, offset = 0x4, fixed_abs, tag = 'smem constant byte address 0x4 - core index']
  #allocation1 [shape = 'u32[144,128]{1,0:T(1,128)}', space=vmem, size = 0x12000, scoped, tag = 'internal scratch']
  %s0 = inlined_call_operand.vmem [shape: f32[4,512], index: 0, kind: input, shape index: {}]
  %s1 = inlined_call_operand.vmem [shape: f32[8,24], index: 1, kind: input, shape index: {}]
  %s2 = inlined_call_operand.vmem [shape: f32[8,1], index: 2, kind: input, shape index: {}]
  %s3 = inlined_call_operand.hbm [shape: f32[8,24], index: 3, kind: input, shape index: {}]
  %s4 = inlined_call_operand.vmem [shape: f32[8,1], index: 4, kind: input, shape index: {}]
  %s5 = inlined_call_operand.vmem [shape: f32[4,24], index: 5, kind: input, shape index: {}]
  %s6 = inlined_call_operand.vmem [shape: f32[4,1], index: 6, kind: input, shape index: {}]
  %s7 = inlined_call_operand.hbm [shape: f32[4,512], index: 7, kind: output, shape index: {}]
  %s8 = sld [smem:[#allocation0]]
  $region65: #{tpu_custom_call.1} parent=0
    _
  %s10 = ssub.s32 1, %s8
  %s11 = scalar_select 0, %s10, %s8
  $region1: #{tpu_custom_call.1} parent=0
    #allocation2 [shape = 'u8[4096]{0}', space=vmem, size = 0x1000, scoped, tag = 'input window, operand 3, single buffered']
    #allocation3 [shape = 's32[2]{0}', space=sflag, size = 0x8, scoped, tag = 'scoped memory for tpu_custom_call.1']
    #allocation4 [shape = 's32[2]{0}', space=sflag, size = 0x8, scoped, tag = 'scoped memory for tpu_custom_call.1']
    #allocation5 [shape = 'u8[8192]{0}', space=vmem, size = 0x2000, scoped, tag = 'output window, operand 0']
    %12 = vsyncpa [#allocation3], 0
    %13 = vsyncpa [#allocation4], 0
    %s14 = scalar_lea.sflag [#allocation4], 1
    %15 = vsyncpa %s14, 0
    loop: start=0, step=1, limit=4
    $region2: #{tpu_custom_call.1} parent=1 // loop_pre_header
      _
    $region3: #{tpu_custom_call.1} parent=1 // loop_header
      %s17 = sphi 0, %s21
      %p18 = scmp.ge.s32.totalorder %s17, 4
      %s27 = sphi 0, %s29
      %s30 = sphi 0, %s27
      %s31 = sphi 0, %s30
      %s47 = sphi 0, %s31
      %s51 = sphi 0, %s51
      %s53 = sphi 0, %s51
      %s54 = sphi 0, %s53
      %s68 = sphi 0, %s54
      %s72 = sphi 0, %s72
      %s74 = sphi 0, %s72
      %s75 = sphi 0, %s74
      %s89 = sphi 0, %s75
      %s93 = sphi 0, %s93
      %s95 = sphi 0, %s93
      %s96 = sphi 0, %s95
      %s110 = sphi 0, %s96
      %s114 = sphi 0, %s114
      %s116 = sphi 0, %s114
      %s117 = sphi 0, %s116
      %s131 = sphi 0, %s117
      %s135 = sphi 0, %s135
      %s137 = sphi 0, %s135
      %s138 = sphi 0, %s137
      %s152 = sphi 0, %s138
      %s156 = sphi 0, %s156
      %s158 = sphi 0, %s156
      %s159 = sphi 0, %s158
      %s173 = sphi 0, %s159
      %s179 = sphi 0, %s181
      %s182 = sphi 0, %s179
      %s183 = sphi 0, %s182
      %s199 = sphi 0, %s183
    $region4: #{tpu_custom_call.1} parent=1 // loop_header_branch
      %20 = sbr.rel (%p18) target = $region8
    $region5: #{tpu_custom_call.1} parent=1 // loop_body
      %s22 = ssub.s32 %s17, 1
      %s23 = ssub.s32 %s17, 2
      %s24 = sadd.s32 %s17, 1
      %s25 = ssub.s32 %s17, %s24
      %p26 = scmp.eq.s32.totalorder %s25, 0
      %s28 = sadd.s32 %s27, 1
      %s29 = scalar_select %p26, %s27, %s28
      %p32 = pneg %p26
      %p33 = scmp.eq.s32.totalorder %s17, 1
      %p34 = por %p32, %p33
      %p35 = scmp.ne.s32.totalorder %s27, %s30
      %p36 = scmp.eq.s32.totalorder %s17, 0
      %p37 = por %p35, %p36
      %p38 = scmp.ne.s32.totalorder %s27, %s30
      %p39 = scmp.eq.s32.totalorder %s22, 1
      %p40 = por %p38, %p39
      %p41 = scmp.ne.s32.totalorder %s30, %s31
      %p42 = scmp.eq.s32.totalorder %s22, 0
      %p43 = por %p41, %p42
      %p44 = scmp.ne.s32.totalorder %s30, %s31
      %p45 = scmp.eq.s32.totalorder %s23, 1
      %p46 = por %p44, %p45
      %p48 = scmp.ne.s32.totalorder %s31, %s47
      %p49 = scmp.eq.s32.totalorder %s23, 0
      %p50 = por %p48, %p49
      %s52 = sadd.s32 %s51, 1
      %p55 = scmp.eq.s32.totalorder %s17, 1
      %p56 = scmp.ne.s32.totalorder %s51, %s53
      %p57 = scmp.eq.s32.totalorder %s17, 0
      %p58 = por %p56, %p57
      %p59 = scmp.ne.s32.totalorder %s51, %s53
      %p60 = scmp.eq.s32.totalorder %s22, 1
      %p61 = por %p59, %p60
      %p62 = scmp.ne.s32.totalorder %s53, %s54
      %p63 = scmp.eq.s32.totalorder %s22, 0
      %p64 = por %p62, %p63
      %p65 = scmp.ne.s32.totalorder %s53, %s54
      %p66 = scmp.eq.s32.totalorder %s23, 1
      %p67 = por %p65, %p66
      %p69 = scmp.ne.s32.totalorder %s54, %s68
      %p70 = scmp.eq.s32.totalorder %s23, 0
      %p71 = por %p69, %p70
      %s73 = sadd.s32 %s72, 1
      %p76 = scmp.eq.s32.totalorder %s17, 1
      %p77 = scmp.ne.s32.totalorder %s72, %s74
      %p78 = scmp.eq.s32.totalorder %s17, 0
      %p79 = por %p77, %p78
      %p80 = scmp.ne.s32.totalorder %s72, %s74
      %p81 = scmp.eq.s32.totalorder %s22, 1
      %p82 = por %p80, %p81
      %p83 = scmp.ne.s32.totalorder %s74, %s75
      %p84 = scmp.eq.s32.totalorder %s22, 0
      %p85 = por %p83, %p84
      %p86 = scmp.ne.s32.totalorder %s74, %s75
      %p87 = scmp.eq.s32.totalorder %s23, 1
      %p88 = por %p86, %p87
      %p90 = scmp.ne.s32.totalorder %s75, %s89
      %p91 = scmp.eq.s32.totalorder %s23, 0
      %p92 = por %p90, %p91
      %s94 = sadd.s32 %s93, 1
      %p97 = scmp.eq.s32.totalorder %s17, 1
      %p98 = scmp.ne.s32.totalorder %s93, %s95
      %p99 = scmp.eq.s32.totalorder %s17, 0
      %p100 = por %p98, %p99
      %p101 = scmp.ne.s32.totalorder %s93, %s95
      %p102 = scmp.eq.s32.totalorder %s22, 1
      %p103 = por %p101, %p102
      %p104 = scmp.ne.s32.totalorder %s95, %s96
      %p105 = scmp.eq.s32.totalorder %s22, 0
      %p106 = por %p104, %p105
      %p107 = scmp.ne.s32.totalorder %s95, %s96
      %p108 = scmp.eq.s32.totalorder %s23, 1
      %p109 = por %p107, %p108
      %p111 = scmp.ne.s32.totalorder %s96, %s110
      %p112 = scmp.eq.s32.totalorder %s23, 0
      %p113 = por %p111, %p112
      %s115 = sadd.s32 %s114, 1
      %p118 = scmp.eq.s32.totalorder %s17, 1
      %p119 = scmp.ne.s32.totalorder %s114, %s116
      %p120 = scmp.eq.s32.totalorder %s17, 0
      %p121 = por %p119, %p120
      %p122 = scmp.ne.s32.totalorder %s114, %s116
      %p123 = scmp.eq.s32.totalorder %s22, 1
      %p124 = por %p122, %p123
      %p125 = scmp.ne.s32.totalorder %s116, %s117
      %p126 = scmp.eq.s32.totalorder %s22, 0
      %p127 = por %p125, %p126
      %p128 = scmp.ne.s32.totalorder %s116, %s117
      %p129 = scmp.eq.s32.totalorder %s23, 1
      %p130 = por %p128, %p129
      %p132 = scmp.ne.s32.totalorder %s117, %s131
      %p133 = scmp.eq.s32.totalorder %s23, 0
      %p134 = por %p132, %p133
      %s136 = sadd.s32 %s135, 1
      %p139 = scmp.eq.s32.totalorder %s17, 1
      %p140 = scmp.ne.s32.totalorder %s135, %s137
      %p141 = scmp.eq.s32.totalorder %s17, 0
      %p142 = por %p140, %p141
      %p143 = scmp.ne.s32.totalorder %s135, %s137
      %p144 = scmp.eq.s32.totalorder %s22, 1
      %p145 = por %p143, %p144
      %p146 = scmp.ne.s32.totalorder %s137, %s138
      %p147 = scmp.eq.s32.totalorder %s22, 0
      %p148 = por %p146, %p147
      %p149 = scmp.ne.s32.totalorder %s137, %s138
      %p150 = scmp.eq.s32.totalorder %s23, 1
      %p151 = por %p149, %p150
      %p153 = scmp.ne.s32.totalorder %s138, %s152
      %p154 = scmp.eq.s32.totalorder %s23, 0
      %p155 = por %p153, %p154
      %s157 = sadd.s32 %s156, 1
      %p160 = scmp.eq.s32.totalorder %s17, 1
      %p161 = scmp.ne.s32.totalorder %s156, %s158
      %p162 = scmp.eq.s32.totalorder %s17, 0
      %p163 = por %p161, %p162
      %p164 = scmp.ne.s32.totalorder %s156, %s158
      %p165 = scmp.eq.s32.totalorder %s22, 1
      %p166 = por %p164, %p165
      %p167 = scmp.ne.s32.totalorder %s158, %s159
      %p168 = scmp.eq.s32.totalorder %s22, 0
      %p169 = por %p167, %p168
      %p170 = scmp.ne.s32.totalorder %s158, %s159
      %p171 = scmp.eq.s32.totalorder %s23, 1
      %p172 = por %p170, %p171
      %p174 = scmp.ne.s32.totalorder %s159, %s173
      %p175 = scmp.eq.s32.totalorder %s23, 0
      %p176 = por %p174, %p175
      %s177 = ssub.s32 %s17, %s24
      %p178 = scmp.eq.s32.totalorder %s177, 0
      %s180 = sadd.s32 %s179, 1
      %s181 = scalar_select %p178, %s179, %s180
      %p184 = pneg %p178
      %p185 = scmp.eq.s32.totalorder %s17, 1
      %p186 = por %p184, %p185
      %p187 = scmp.ne.s32.totalorder %s179, %s182
      %p188 = scmp.eq.s32.totalorder %s17, 0
      %p189 = por %p187, %p188
      %p190 = scmp.ne.s32.totalorder %s179, %s182
      %p191 = scmp.eq.s32.totalorder %s22, 1
      %p192 = por %p190, %p191
      %p193 = scmp.ne.s32.totalorder %s182, %s183
      %p194 = scmp.eq.s32.totalorder %s22, 0
      %p195 = por %p193, %p194
      %p196 = scmp.ne.s32.totalorder %s182, %s183
      %p197 = scmp.eq.s32.totalorder %s23, 1
      %p198 = por %p196, %p197
      %p200 = scmp.ne.s32.totalorder %s183, %s199
      %p201 = scmp.eq.s32.totalorder %s23, 0
      %p202 = por %p200, %p201
      %p203 = scmp.le.s32.totalorder 1, %s17
      %p204 = scmp.lt.s32.totalorder %s17, 3
      %p205 = pnand %p203, %p204
      %p206 = pneg %p205
      // Predicated region
      $region9: #{tpu_custom_call.1} parent=5 // pred_check
        _
      $region10: #{tpu_custom_call.1} parent=5 // pred_check_branch
        %208 = sbr.rel (%p205) target = $region12
      $region11: #{tpu_custom_call.1} parent=5 // pred_region
        %s209 = ssub.s32 %s17, 1
        // Predicated region
        $region13: #{tpu_custom_call.1} parent=11 // pred_check
          %p210 = pneg %p64
        $region14: #{tpu_custom_call.1} parent=11 // pred_check_branch
          %212 = sbr.rel (%p210) target = $region16
        $region15: #{tpu_custom_call.1} parent=11 // pred_region
          _
        $region16: #{tpu_custom_call.1} parent=11 // pred_fallthru
          _
        // Predicated region
        $region17: #{tpu_custom_call.1} parent=11 // pred_check
          %p213 = pneg %p85
        $region18: #{tpu_custom_call.1} parent=11 // pred_check_branch
          %215 = sbr.rel (%p213) target = $region20
        $region19: #{tpu_custom_call.1} parent=11 // pred_region
          _
        $region20: #{tpu_custom_call.1} parent=11 // pred_fallthru
          _
        // Predicated region
        $region21: #{tpu_custom_call.1} parent=11 // pred_check
          %p216 = pneg %p106
        $region22: #{tpu_custom_call.1} parent=11 // pred_check_branch
          %218 = sbr.rel (%p216) target = $region24
        $region23: #{tpu_custom_call.1} parent=11 // pred_region
          %s220 = ssub.s32 128, 128
          %221 = vsyncadd [#allocation3], %s220
          %s223 = sshll.u32 [#allocation2], 4
          %s224 = int_to_ptr.vmem [resolvable:$true] %s223
          %226 = dma.hbm_to_vmem [thread:$0]  %s3, 128, %s224, [#allocation3]
        $region24: #{tpu_custom_call.1} parent=11 // pred_fallthru
          _
        // Predicated region
        $region25: #{tpu_custom_call.1} parent=11 // pred_check
          %p227 = pneg %p127
        $region26: #{tpu_custom_call.1} parent=11 // pred_check_branch
          %229 = sbr.rel (%p227) target = $region28
        $region27: #{tpu_custom_call.1} parent=11 // pred_region
          _
        $region28: #{tpu_custom_call.1} parent=11 // pred_fallthru
          _
        // Predicated region
        $region29: #{tpu_custom_call.1} parent=11 // pred_check
          %p230 = pneg %p148
        $region30: #{tpu_custom_call.1} parent=11 // pred_check_branch
          %232 = sbr.rel (%p230) target = $region32
        $region31: #{tpu_custom_call.1} parent=11 // pred_region
          _
        $region32: #{tpu_custom_call.1} parent=11 // pred_fallthru
          _
        // Predicated region
        $region33: #{tpu_custom_call.1} parent=11 // pred_check
          %p233 = pneg %p169
        $region34: #{tpu_custom_call.1} parent=11 // pred_check_branch
          %235 = sbr.rel (%p233) target = $region36
        $region35: #{tpu_custom_call.1} parent=11 // pred_region
          _
        $region36: #{tpu_custom_call.1} parent=11 // pred_fallthru
          _
      $region12: #{tpu_custom_call.1} parent=5 // pred_fallthru
        _
      %p236 = scmp.lt.s32.totalorder %s17, 2
      // Predicated region
      $region37: #{tpu_custom_call.1} parent=5 // pred_check
        %p237 = pneg %p236
      $region38: #{tpu_custom_call.1} parent=5 // pred_check_branch
        %239 = sbr.rel (%p237) target = $region40
      $region39: #{tpu_custom_call.1} parent=5 // pred_region
        // Predicated region
        $region41: #{tpu_custom_call.1} parent=39 // pred_check
          %p240 = pneg %p37
        $region42: #{tpu_custom_call.1} parent=39 // pred_check_branch
          %242 = sbr.rel (%p240) target = $region44
        $region43: #{tpu_custom_call.1} parent=39 // pred_region
          %s243 = smul.u32 2, %s17
          %p244 = scmp.lt.s32.totalorder %s243, 3
          %s245 = scalar_select %p244, %s243, 3
          %s246 = smul.addr %s245, 4
          %s247 = scalar_lea.vmem %s0, %s246
          %s248 = smul.u32 2, %s17
        $region44: #{tpu_custom_call.1} parent=39 // pred_fallthru
          _
      $region40: #{tpu_custom_call.1} parent=5 // pred_fallthru
        _
      %p249 = scmp.le.s32.totalorder 1, %s17
      %p250 = scmp.lt.s32.totalorder %s17, 3
      %p251 = pnand %p249, %p250
      %p252 = pneg %p251
      // Predicated region
      $region45: #{tpu_custom_call.1} parent=5 // pred_check
        _
      $region46: #{tpu_custom_call.1} parent=5 // pred_check_branch
        %254 = sbr.rel (%p251) target = $region48
      $region47: #{tpu_custom_call.1} parent=5 // pred_region
        %s255 = ssub.s32 %s17, 1
        // Predicated region
        $region49: #{tpu_custom_call.1} parent=47 // pred_check
          %p256 = pneg %p106
        $region50: #{tpu_custom_call.1} parent=47 // pred_check_branch
          %258 = sbr.rel (%p256) target = $region52
        $region51: #{tpu_custom_call.1} parent=47 // pred_region
          %259 = dma.done [#allocation3], 128
        $region52: #{tpu_custom_call.1} parent=47 // pred_fallthru
          _
        %s260 = smul.u32 2, %s22
        %p261 = scmp.lt.s32.totalorder %s260, 3
        %s262 = scalar_select %p261, %s260, 3
        %s263 = smul.addr %s262, 4
        %s264 = scalar_lea.vmem %s0, %s263
        %p265 = pneg %p43
        %p266 = pneg %p40
        %p267 = pneg %p64
        %p268 = pneg %p61
        %p269 = pneg %p85
        %p270 = pneg %p82
        %p271 = pneg %p106
        %p272 = pneg %p103
        %p273 = pneg %p127
        %p274 = pneg %p124
        %p275 = pneg %p148
        %p276 = pneg %p145
        %p277 = pneg %p169
        %p278 = pneg %p166
        %p279 = pneg %p195
        %p280 = pneg %p192
        %s281 = sand.u32 %s182, 1
        %s282 = scalar_lea.sflag [#allocation4], %s281
        %s283 = sand.u32 %s182, 1
        %s284 = smul.addr %s283, 8
        %s285 = scalar_lea.vmem [#allocation5], %s284
        %s286 = smul.u32 2, %s22
        %p287 = scmp.lt.s32.totalorder %s286, 3
        %s288 = scalar_select %p287, %s286, 3
        %s289 = smul.addr %s288, 4
        %s290 = scalar_lea.vmem %s0, %s289
        %s291 = smul.u32 2, %s22
        %s292 = smul.u32 2, %s22
        %v293 = vlaneseq
        %v294 = vand.u32 %v293, 127
        %v295 = vadd.s32 %v294, 128
        %vm296 = vcmp.lt.s32.totalorder %v294, 0
        %v297 = vsub.s32 0, %v294
        %v298 = vsel %vm296, %v297, %v294
        %v299 = vshrl.u32 %v298, 7
        %v300 = vand.u32 %v298, 127
        %v301 = vsub.s32 0, %v300
        %v302 = vsel %vm296, %v301, %v300
        %vm303 = vcmp.lt.s32.totalorder %v295, 0
        %v304 = vsub.s32 0, %v295
        %v305 = vsel %vm303, %v304, %v295
        %v306 = vshrl.u32 %v305, 7
        %v307 = vand.u32 %v305, 127
        %v308 = vsub.s32 0, %v307
        %v309 = vsel %vm303, %v308, %v307
        %vm310 = vcmp.ne.s32.totalorder %v302, 0
        %vm311 = vcmp.ne.s32.totalorder %v309, 0
        %vm312 = vcmp.lt.s32.totalorder %v302, 0
        %vm313 = vcmp.lt.s32.totalorder %v309, 0
        %vm314 = vmand %vm312, %vm310
        %vm315 = vmand %vm313, %vm311
        %v316 = vadd.s32 %v302, 128
        %v317 = vadd.s32 %v309, 128
        %v318 = vsel %vm314, %v316, %v302
        %v319 = vsel %vm315, %v317, %v309
        %vm320 = vcmp.ne.s32.totalorder %v318, 0
        %vm321 = vcmp.ne.s32.totalorder %v319, 0
        %v322 = vsel %vm320, 1, 0
        %v323 = vsel %vm321, 1, 0
        %v324 = vcvt.s32.f32 %v322
        %v325 = vcvt.s32.f32 %v323
        %vm326 = vcmp.ne.s32.totalorder %v318, 127
        %vm327 = vcmp.ne.s32.totalorder %v319, 127
        %v328 = vsel %vm326, 1, 0
        %v329 = vsel %vm327, 1, 0
        %v330 = vcvt.s32.f32 %v328
        %v331 = vcvt.s32.f32 %v329
        %v332 = vld [vmem:[%s290] sm:$0xff]
        %v334 = vcombine.high %v332, %v332
        %vm336 = vcmask 1043456
        %v337 = vsel %vm336, %v332, 0.0
        %v338 = vsel %vm336, %v334, 0.0
        %339 = vrot.lane.b32.xlu0 %v337, 1
        %v340 = vpop.permute.xlu0 %339
        %341 = vrot.lane.b32.xlu0 %v338, 1
        %v342 = vpop.permute.xlu0 %341
        %vm343 = vcmp.lt.s32.totalorder %v294, 1
        %v344 = vsel %vm343, %v340, %v342
        %v345 = vsel %vm343, %v342, %v340
        %v346 = vmul.f32 %v345, %v324
        %v347 = vmul.f32 %v344, %v325
        %348 = vrot.lane.b32.xlu0 %v337, 127
        %v349 = vpop.permute.xlu0 %348
        %350 = vrot.lane.b32.xlu0 %v338, 127
        %v351 = vpop.permute.xlu0 %350
        %vm352 = vcmp.lt.s32.totalorder %v294, 127
        %v353 = vsel %vm352, %v349, %v351
        %v354 = vsel %vm352, %v351, %v349
        %v355 = vmul.f32 %v353, %v330
        %v356 = vmul.f32 %v354, %v331
        %v357 = vld [vmem:[%s1] sm:$0xff]
        %v358 = vld [vmem:[%s2] sm:$0xff]
        %360 = vset.pattern.permute.xlu0 0
        %361 = vperm.xlu0 %360, %v358
        %v362 = vpop.permute.xlu0 %361
        %vm364 = vcmask 195584
        %v366 = vsel %vm364, %v357, 0
        %368 = vmatprep.subr.mxu0 0.0
        %369 = vmatpush1.msra.mxu0 0.0
        %370 = vmatprep.subr.mxu0 0.0
        %371 = vmatpush1.msra.mxu0 0.0
        %372 = vmatprep.subr.mxu0 0.0
        %373 = vmatpush1.msra.mxu0 0.0
        %374 = vmatprep.subr.mxu0 0.0
        %375 = vmatpush1.msra.mxu0 0.0
        %376 = vmatprep.subr.mxu0 0.0
        %377 = vmatpush1.msra.mxu0 0.0
        %378 = vmatprep.subr.mxu0 0.0
        %379 = vmatpush1.msra.mxu0 0.0
        %380 = vmatprep.subr.mxu0 0.0
        %381 = vmatpush1.msra.mxu0 0.0
        %382 = vmatprep.subr.mxu0 0.0
        %383 = vmatpush1.msra.mxu0 0.0
        %384 = vmatprep.subr.mxu0 0.0
        %385 = vmatpush1.msra.mxu0 0.0
        %386 = vmatprep.subr.mxu0 0.0
        %387 = vmatpush1.msra.mxu0 0.0
        %388 = vmatprep.subr.mxu0 0.0
        %389 = vmatpush1.msra.mxu0 0.0
        %390 = vmatprep.subr.mxu0 0.0
        %391 = vmatpush1.msra.mxu0 0.0
        %392 = vmatprep.subr.mxu0 0.0
        %393 = vmatpush1.msra.mxu0 0.0
        %394 = vmatprep.subr.mxu0 %v356
        %395 = vmatpush1.msra.mxu0 %v355
        %396 = vmatprep.subr.mxu0 %v338
        %397 = vmatpush1.msra.mxu0 %v337
        %398 = vmatprep.subr.mxu0 %v347
        %399 = vmatpush1.msra.mxu0 %v346
        %400 = vmatprep.subr.mxu0 0.0
        %401 = vmatpush2.msra.mxu0 0.0
        %402 = vmatprep.subr.mxu0 0.0
        %403 = vmatpush2.msra.mxu0 0.0
        %404 = vmatprep.subr.mxu0 0.0
        %405 = vmatpush2.msra.mxu0 0.0
        %406 = vmatprep.subr.mxu0 0.0
        %407 = vmatpush2.msra.mxu0 0.0
        %408 = vmatprep.subr.mxu0 0.0
        %409 = vmatpush2.msra.mxu0 0.0
        %410 = vmatprep.subr.mxu0 0.0
        %411 = vmatpush2.msra.mxu0 0.0
        %412 = vmatprep.subr.mxu0 0.0
        %413 = vmatpush2.msra.mxu0 0.0
        %414 = vmatprep.subr.mxu0 0.0
        %415 = vmatpush2.msra.mxu0 0.0
        %416 = vmatprep.subr.mxu0 0.0
        %417 = vmatpush2.msra.mxu0 0.0
        %418 = vmatprep.subr.mxu0 0.0
        %419 = vmatpush2.msra.mxu0 0.0
        %420 = vmatprep.subr.mxu0 0.0
        %421 = vmatpush2.msra.mxu0 0.0
        %422 = vmatprep.subr.mxu0 0.0
        %423 = vmatpush2.msra.mxu0 0.0
        %424 = vmatprep.subr.mxu0 0.0
        %425 = vmatpush2.msra.mxu0 0.0
        %426 = vmatprep.subr.mxu0 0.0
        %427 = vmatpush2.msra.mxu0 0.0
        %428 = vmatprep.subr.mxu0 0.0
        %429 = vmatpush2.msra.mxu0 0.0
        %430 = vmatprep.subr.mxu0 0.0
        %431 = vmatpush2.msra.mxu0 0.0
        %432 = vmatprep.mubr.f32.mxu0 0.0
        %433 = vmatmul.mubr.f32.gmra.mxu0 %v366
        %v434 = vpop.f32.mrf.mxu0
        %v435 = vadd.f32 %v362, %v434
        %v436 = vpop.f32.mrf.mxu0
        %v437 = vadd.f32 %v362, %v436
        %438 = vdwg.mxu0
        %v439 = vmax.f32 %v435, 0.0
        %v440 = vmax.f32 %v437, 0.0
        %441 = vrot.lane.b32.xlu0 %v439, 1
        %v442 = vpop.permute.xlu0 %441
        %443 = vrot.lane.b32.xlu0 %v440, 1
        %v444 = vpop.permute.xlu0 %443
        %v445 = vsel %vm343, %v442, %v444
        %v446 = vsel %vm343, %v444, %v442
        %v447 = vmul.f32 %v446, %v324
        %v448 = vmul.f32 %v445, %v325
        %449 = vrot.lane.b32.xlu0 %v439, 127
        %v450 = vpop.permute.xlu0 %449
        %451 = vrot.lane.b32.xlu0 %v440, 127
        %v452 = vpop.permute.xlu0 %451
        %v453 = vsel %vm352, %v450, %v452
        %v454 = vsel %vm352, %v452, %v450
        %v455 = vmul.f32 %v453, %v330
        %v456 = vmul.f32 %v454, %v331
        %v457 = vld [vmem:[#allocation2] sm:$0xff]
        %v458 = vld [vmem:[%s4] sm:$0xff]
        %460 = vset.pattern.permute.xlu0 0
        %461 = vperm.xlu0 %460, %v458
        %v462 = vpop.permute.xlu0 %461
        %v465 = vsel %vm364, %v457, 0
        %467 = vmatprep.subr.mxu0 0.0
        %468 = vmatpush1.msra.mxu0 0.0
        %469 = vmatprep.subr.mxu0 0.0
        %470 = vmatpush1.msra.mxu0 0.0
        %471 = vmatprep.subr.mxu0 0.0
        %472 = vmatpush1.msra.mxu0 0.0
        %473 = vmatprep.subr.mxu0 0.0
        %474 = vmatpush1.msra.mxu0 0.0
        %475 = vmatprep.subr.mxu0 0.0
        %476 = vmatpush1.msra.mxu0 0.0
        %477 = vmatprep.subr.mxu0 0.0
        %478 = vmatpush1.msra.mxu0 0.0
        %479 = vmatprep.subr.mxu0 0.0
        %480 = vmatpush1.msra.mxu0 0.0
        %481 = vmatprep.subr.mxu0 0.0
        %482 = vmatpush1.msra.mxu0 0.0
        %483 = vmatprep.subr.mxu0 0.0
        %484 = vmatpush1.msra.mxu0 0.0
        %485 = vmatprep.subr.mxu0 0.0
        %486 = vmatpush1.msra.mxu0 0.0
        %487 = vmatprep.subr.mxu0 0.0
        %488 = vmatpush1.msra.mxu0 0.0
        %489 = vmatprep.subr.mxu0 0.0
        %490 = vmatpush1.msra.mxu0 0.0
        %491 = vmatprep.subr.mxu0 0.0
        %492 = vmatpush1.msra.mxu0 0.0
        %493 = vmatprep.subr.mxu0 %v456
        %494 = vmatpush1.msra.mxu0 %v455
        %495 = vmatprep.subr.mxu0 %v440
        %496 = vmatpush1.msra.mxu0 %v439
        %497 = vmatprep.subr.mxu0 %v448
        %498 = vmatpush1.msra.mxu0 %v447
        %499 = vmatprep.subr.mxu0 0.0
        %500 = vmatpush2.msra.mxu0 0.0
        %501 = vmatprep.subr.mxu0 0.0
        %502 = vmatpush2.msra.mxu0 0.0
        %503 = vmatprep.subr.mxu0 0.0
        %504 = vmatpush2.msra.mxu0 0.0
        %505 = vmatprep.subr.mxu0 0.0
        %506 = vmatpush2.msra.mxu0 0.0
        %507 = vmatprep.subr.mxu0 0.0
        %508 = vmatpush2.msra.mxu0 0.0
        %509 = vmatprep.subr.mxu0 0.0
        %510 = vmatpush2.msra.mxu0 0.0
        %511 = vmatprep.subr.mxu0 0.0
        %512 = vmatpush2.msra.mxu0 0.0
        %513 = vmatprep.subr.mxu0 0.0
        %514 = vmatpush2.msra.mxu0 0.0
        %515 = vmatprep.subr.mxu0 0.0
        %516 = vmatpush2.msra.mxu0 0.0
        %517 = vmatprep.subr.mxu0 0.0
        %518 = vmatpush2.msra.mxu0 0.0
        %519 = vmatprep.subr.mxu0 0.0
        %520 = vmatpush2.msra.mxu0 0.0
        %521 = vmatprep.subr.mxu0 0.0
        %522 = vmatpush2.msra.mxu0 0.0
        %523 = vmatprep.subr.mxu0 0.0
        %524 = vmatpush2.msra.mxu0 0.0
        %525 = vmatprep.subr.mxu0 0.0
        %526 = vmatpush2.msra.mxu0 0.0
        %527 = vmatprep.subr.mxu0 0.0
        %528 = vmatpush2.msra.mxu0 0.0
        %529 = vmatprep.subr.mxu0 0.0
        %530 = vmatpush2.msra.mxu0 0.0
        %531 = vmatprep.mubr.f32.mxu0 0.0
        %532 = vmatmul.mubr.f32.gmra.mxu0 %v465
        %v533 = vpop.f32.mrf.mxu0
        %v534 = vadd.f32 %v462, %v533
        %v535 = vpop.f32.mrf.mxu0
        %v536 = vadd.f32 %v462, %v535
        %537 = vdwg.mxu0
        %v538 = vmax.f32 %v534, 0.0
        %v539 = vmax.f32 %v536, 0.0
        %540 = vrot.lane.b32.xlu0 %v538, 1
        %v541 = vpop.permute.xlu0 %540
        %542 = vrot.lane.b32.xlu0 %v539, 1
        %v543 = vpop.permute.xlu0 %542
        %v544 = vsel %vm343, %v541, %v543
        %v545 = vsel %vm343, %v543, %v541
        %v546 = vmul.f32 %v545, %v324
        %v547 = vmul.f32 %v544, %v325
        %548 = vrot.lane.b32.xlu0 %v538, 127
        %v549 = vpop.permute.xlu0 %548
        %550 = vrot.lane.b32.xlu0 %v539, 127
        %v551 = vpop.permute.xlu0 %550
        %v552 = vsel %vm352, %v549, %v551
        %v553 = vsel %vm352, %v551, %v549
        %v554 = vmul.f32 %v552, %v330
        %v555 = vmul.f32 %v553, %v331
        %v556 = vld [vmem:[%s5] sm:$0xf]
        %v557 = vld [vmem:[%s6] sm:$0xf]
        %559 = vset.pattern.permute.xlu0 0
        %560 = vperm.xlu0 %559, %v557
        %v561 = vpop.permute.xlu0 %560
        %v564 = vsel %vm364, %v556, 0
        %566 = vmatprep.subr.mxu0 0.0
        %567 = vmatpush1.msra.mxu0 0.0
        %568 = vmatprep.subr.mxu0 0.0
        %569 = vmatpush1.msra.mxu0 0.0
        %570 = vmatprep.subr.mxu0 0.0
        %571 = vmatpush1.msra.mxu0 0.0
        %572 = vmatprep.subr.mxu0 0.0
        %573 = vmatpush1.msra.mxu0 0.0
        %574 = vmatprep.subr.mxu0 0.0
        %575 = vmatpush1.msra.mxu0 0.0
        %576 = vmatprep.subr.mxu0 0.0
        %577 = vmatpush1.msra.mxu0 0.0
        %578 = vmatprep.subr.mxu0 0.0
        %579 = vmatpush1.msra.mxu0 0.0
        %580 = vmatprep.subr.mxu0 0.0
        %581 = vmatpush1.msra.mxu0 0.0
        %582 = vmatprep.subr.mxu0 0.0
        %583 = vmatpush1.msra.mxu0 0.0
        %584 = vmatprep.subr.mxu0 0.0
        %585 = vmatpush1.msra.mxu0 0.0
        %586 = vmatprep.subr.mxu0 0.0
        %587 = vmatpush1.msra.mxu0 0.0
        %588 = vmatprep.subr.mxu0 0.0
        %589 = vmatpush1.msra.mxu0 0.0
        %590 = vmatprep.subr.mxu0 0.0
        %591 = vmatpush1.msra.mxu0 0.0
        %592 = vmatprep.subr.mxu0 %v555
        %593 = vmatpush1.msra.mxu0 %v554
        %594 = vmatprep.subr.mxu0 %v539
        %595 = vmatpush1.msra.mxu0 %v538
        %596 = vmatprep.subr.mxu0 %v547
        %597 = vmatpush1.msra.mxu0 %v546
        %598 = vmatprep.subr.mxu0 0.0
        %599 = vmatpush2.msra.mxu0 0.0
        %600 = vmatprep.subr.mxu0 0.0
        %601 = vmatpush2.msra.mxu0 0.0
        %602 = vmatprep.subr.mxu0 0.0
        %603 = vmatpush2.msra.mxu0 0.0
        %604 = vmatprep.subr.mxu0 0.0
        %605 = vmatpush2.msra.mxu0 0.0
        %606 = vmatprep.subr.mxu0 0.0
        %607 = vmatpush2.msra.mxu0 0.0
        %608 = vmatprep.subr.mxu0 0.0
        %609 = vmatpush2.msra.mxu0 0.0
        %610 = vmatprep.subr.mxu0 0.0
        %611 = vmatpush2.msra.mxu0 0.0
        %612 = vmatprep.subr.mxu0 0.0
        %613 = vmatpush2.msra.mxu0 0.0
        %614 = vmatprep.subr.mxu0 0.0
        %615 = vmatpush2.msra.mxu0 0.0
        %616 = vmatprep.subr.mxu0 0.0
        %617 = vmatpush2.msra.mxu0 0.0
        %618 = vmatprep.subr.mxu0 0.0
        %619 = vmatpush2.msra.mxu0 0.0
        %620 = vmatprep.subr.mxu0 0.0
        %621 = vmatpush2.msra.mxu0 0.0
        %622 = vmatprep.subr.mxu0 0.0
        %623 = vmatpush2.msra.mxu0 0.0
        %624 = vmatprep.subr.mxu0 0.0
        %625 = vmatpush2.msra.mxu0 0.0
        %626 = vmatprep.subr.mxu0 0.0
        %627 = vmatpush2.msra.mxu0 0.0
        %628 = vmatprep.subr.mxu0 0.0
        %629 = vmatpush2.msra.mxu0 0.0
        %630 = vmatprep.mubr.f32.mxu0 0.0
        %631 = vmatmul.mubr.f32.gmra.mxu0 %v564
        %v632 = vpop.f32.mrf.mxu0
        %v633 = vadd.f32 %v561, %v632
        %v634 = vpop.f32.mrf.mxu0
        %v635 = vadd.f32 %v561, %v634
        %636 = vdwg.mxu0
        %v639 = vcombine.low %v633, %v635
        %641 = vst [vmem:[%s285] sm:$0xff] %v639
        %s642 = sand.u32 %s182, 1
        %s643 = scalar_lea.sflag [#allocation4], %s642
        %s644 = sand.u32 %s182, 1
        %s645 = smul.addr %s644, 8
        %s646 = scalar_lea.vmem [#allocation5], %s645
        // Predicated region
        $region53: #{tpu_custom_call.1} parent=47 // pred_check
          %p647 = pneg %p192
        $region54: #{tpu_custom_call.1} parent=47 // pred_check_branch
          %649 = sbr.rel (%p647) target = $region56
        $region55: #{tpu_custom_call.1} parent=47 // pred_region
          %s650 = smul.u32 2, %s22
          %s652 = ssub.s32 128, 128
          %653 = vsyncadd %s643, %s652
          %s654 = smul.addr %s650, 64
          %s655 = scalar_lea.hbm %s7, %s654
          %s657 = sshll.u32 %s646, 4
          %s658 = int_to_ptr.vmem [resolvable:$true] %s657
          %660 = dma.vmem_to_hbm [thread:$0]  %s658, 128, %s655, %s643
        $region56: #{tpu_custom_call.1} parent=47 // pred_fallthru
          _
      $region48: #{tpu_custom_call.1} parent=5 // pred_fallthru
        _
      %p661 = scmp.le.s32.totalorder 2, %s17
      // Predicated region
      $region57: #{tpu_custom_call.1} parent=5 // pred_check
        %p662 = pneg %p661
      $region58: #{tpu_custom_call.1} parent=5 // pred_check_branch
        %664 = sbr.rel (%p662) target = $region60
      $region59: #{tpu_custom_call.1} parent=5 // pred_region
        %s665 = ssub.s32 %s17, 2
        // Predicated region
        $region61: #{tpu_custom_call.1} parent=59 // pred_check
          %p666 = pneg %p198
        $region62: #{tpu_custom_call.1} parent=59 // pred_check_branch
          %668 = sbr.rel (%p666) target = $region64
        $region63: #{tpu_custom_call.1} parent=59 // pred_region
          %s669 = sand.u32 %s183, 1
          %s670 = scalar_lea.sflag [#allocation4], %s669
          %s671 = sand.u32 %s183, 1
          %s672 = smul.addr %s671, 8
          %s673 = scalar_lea.vmem [#allocation5], %s672
          %674 = dma.done %s670, 128
        $region64: #{tpu_custom_call.1} parent=59 // pred_fallthru
          _
      $region60: #{tpu_custom_call.1} parent=5 // pred_fallthru
        _
    $region6: #{tpu_custom_call.1} parent=1 // loop_footer
      %s21 = sadd.s32 1, %s17
    $region7: #{tpu_custom_call.1} parent=1 // loop_footer_branch
      %16 = sbr.rel target = $region3
    $region8: #{tpu_custom_call.1} parent=1 // loop_exit
      _
    %675 = vsyncpa [#allocation3], 1
    %s676 = scalar_lea.sflag [#allocation3], 1
    %677 = vsyncpa %s676, 1
    %678 = vsyncpa [#allocation4], 1
    %s679 = scalar_lea.sflag [#allocation4], 1
    %680 = vsyncpa %s679, 1

</llo_original>
